<compile_context>
chip_gen: v7x
topology: tpu7x:2x2x1
jax: 0.10.0
libtpu: 0.0.40
codegen_flags: <defaults>
</compile_context>

<pallas_src>
import functools
import math

import jax
import jax.numpy as jnp
from jax.experimental import pallas as pl
from jax.experimental.pallas import tpu as pltpu

_VMEM = pltpu.MemorySpace.VMEM


def _attention_kernel(s, tb, qp_ref, ref_ref, wref_ref, bref_ref, v_ref,
                      u_ref, refout_ref):
    """One grid step = `tb` batch elements as one lane-dense (tb*S, H) slab.

    qp_ref:     (tb, 1, H)  Wq(q) + bq + bref  (projection hoisted to wrapper)
    ref_ref:    (tb*S, H)   raw ref rows for these batch elements
    wref_ref:   (H, H)      Wref^T (resident: constant index_map)
    bref_ref:   (1, H)      Wref bias
    v_ref:      (1, H)      v as a row vector
    u_ref:      (tb, 1, S)  lane-dense u rows (S on the lane axis)
    refout_ref: (tb*S, H)   Wref(ref) + bref
    """
    # Wref linear (bias deferred) for all tb*S rows at once: MXU M-dim = tb*S.
    r_nb = jnp.dot(ref_ref[...], wref_ref[...],
                   preferred_element_type=jnp.float32)               # (tb*S, H)
    # ref-projection output includes the Wref bias (matches nn.Linear).
    refout_ref[...] = (r_nb + bref_ref[...]).astype(refout_ref.dtype)

    v_row = v_ref[...]                                                # (1, H)
    # Static unroll over the tb batch elements of this step (tb is small).
    for i in range(tb):
        q_row = qp_ref[i]                                             # (1, H)
        # tanh(Wq(q) + bq + Wref(ref) + bref): biases pre-folded into q_row.
        t = jnp.tanh(r_nb[i * s:(i + 1) * s, :] + q_row)              # (S, H)
        # u row, lane-dense: contract over H as v_row . t^T -> (1, S) on the
        # MXU (no (S,1) column, no masked narrow store, no XLU reduction).
        u_ref[i] = jax.lax.dot_general(
            v_row, t, (((1,), (1,)), ((), ())),
            preferred_element_type=jnp.float32).astype(u_ref.dtype)


def _pick_tb(batch, size):
    """Batch elements per grid step.

    Wants: divides B; leaves >= 2 grid steps (v7x has 2 TensorCores); keeps the
    flattened (tb*S, H) ref/refout blocks sublane-aligned (tb*S % 8 == 0); and
    stops growing once the MXU M dimension (tb*S) reaches ~256.
    Falls back to a single full-array step (always a legal BlockSpec).
    """
    candidates = [tb for tb in range(1, batch // 2 + 1)
                  if batch % tb == 0 and (tb * size) % 8 == 0]
    if not candidates:
        return batch
    for tb in candidates:            # smallest tb that already fills the MXU
        if tb * size >= 256:
            return tb
    return candidates[-1]            # else the largest aligned tb


def prepare_params(params):
    """One-time (out of hot path) transposes / folds of the PyTorch params."""
    h = params["Wq_w"].shape[0]
    return {
        "wq_t": jnp.asarray(params["Wq_w"]).T,              # (in, out)
        "wref_t": jnp.asarray(params["Wref_w"]).T,          # (in, out)
        "b_comb": (params["Wq_b"] + params["Wref_b"]).reshape(1, h),
        "b_ref": params["Wref_b"].reshape(1, h),
        "v_row": params["v"].reshape(1, h),
    }


def attention_forward(q, ref, prep, *, tb=None):
    """Pallas equivalent of Attention.forward. Returns (u, ref_proj)."""
    B, H = q.shape
    BS = ref.shape[0]
    if BS % B != 0:
        raise ValueError(f"ref rows ({BS}) must be a multiple of batch ({B})")
    S = BS // B

    if tb is None:
        tb = _pick_tb(B, S)
    if B % tb != 0:
        raise ValueError(f"tb ({tb}) must divide batch ({B})")
    n_steps = B // tb

    # Hoisted Wq projection: one (B,H)@(H,H) matmul at full MXU occupancy,
    # with bq + bref folded in so the kernel needs a single broadcast add.
    q_proj = (q @ prep["wq_t"] + prep["b_comb"]).reshape(B, 1, H)

    kernel = functools.partial(_attention_kernel, S, tb)

    u3, refout_flat = pl.pallas_call(
        kernel,
        grid=(n_steps,),
        in_specs=[
            # q_proj: (tb, 1, H) block per step (last-two dims = full dims).
            pl.BlockSpec((tb, 1, H), lambda b: (b, 0, 0), memory_space=_VMEM),
            # ref: per-step (tb*S, H) lane-dense slab.
            pl.BlockSpec((tb * S, H), lambda b: (b, 0), memory_space=_VMEM),
            # Weights / biases / v: constant index_map -> DMA once, resident.
            pl.BlockSpec((H, H), lambda b: (0, 0), memory_space=_VMEM),   # Wref^T
            pl.BlockSpec((1, H), lambda b: (0, 0), memory_space=_VMEM),   # bref
            pl.BlockSpec((1, H), lambda b: (0, 0), memory_space=_VMEM),   # v row
        ],
        out_specs=(
            pl.BlockSpec((tb, 1, S), lambda b: (b, 0, 0), memory_space=_VMEM),
            pl.BlockSpec((tb * S, H), lambda b: (b, 0), memory_space=_VMEM),
        ),
        out_shape=(
            jax.ShapeDtypeStruct((B, 1, S), jnp.float32),
            jax.ShapeDtypeStruct((BS, H), jnp.float32),
        ),
        compiler_params=pltpu.CompilerParams(
            dimension_semantics=("parallel",)),
    )(q_proj, ref, prep["wref_t"], prep["b_ref"], prep["v_row"])

    # Free metadata reshapes in the wrapper (kernel stays 2D / lane-dense).
    return u3.reshape(B, S), refout_flat.reshape(B, S, H)


def attention_reference(q, ref, params):
    """Pure-JAX reference mirroring the PyTorch module."""
    B, H = q.shape
    S = ref.shape[0] // B
    q_proj = q @ params["Wq_w"].T + params["Wq_b"]
    r_proj = (ref @ params["Wref_w"].T + params["Wref_b"]).reshape(B, S, H)
    t = jnp.tanh(q_proj[:, None, :] + r_proj)
    u = jnp.einsum("bsh,h->bs", t, params["v"])
    return u, r_proj


def init_params(key, n_hidden):
    """Deterministic parameter init with PyTorch-like uniform bounds."""
    k_v, k_wq, k_bq, k_wr, k_br = jax.random.split(key, 5)
    bound = 1.0 / math.sqrt(n_hidden)
    uni = lambda k, shape: jax.random.uniform(
        k, shape, dtype=jnp.float32, minval=-bound, maxval=bound)
    return {
        "v": uni(k_v, (n_hidden,)),
        "Wq_w": uni(k_wq, (n_hidden, n_hidden)),    # (out, in) like nn.Linear
        "Wq_b": uni(k_bq, (n_hidden,)),
        "Wref_w": uni(k_wr, (n_hidden, n_hidden)),  # (out, in)
        "Wref_b": uni(k_br, (n_hidden,)),
    }


if __name__ == "__main__":
    B, S, H = 2, 8, 32   # batch, city/sequence size, n_hidden

    key = jax.random.PRNGKey(0)
    k_params, k_q, k_ref = jax.random.split(key, 3)

    params = init_params(k_params, H)
    prep = prepare_params(params)          # one-time: transposes, bias fold, v row
    q = jax.random.normal(k_q, (B, H), dtype=jnp.float32)
    ref = jax.random.normal(k_ref, (B * S, H), dtype=jnp.float32)

    u, ref_proj = attention_forward(q, ref, prep)
    jax.block_until_ready((u, ref_proj))

    u_ref, refp_ref = attention_reference(q, ref, params)
    assert u.shape == (B, S) and ref_proj.shape == (B, S, H)
    assert jnp.allclose(u, u_ref, atol=1e-4, rtol=1e-4)
    assert jnp.allclose(ref_proj, refp_ref, atol=1e-4, rtol=1e-4)

    print("KERNEL_OK")
</pallas_src>

<mosaic_0001>
module attributes {stable_mosaic.version = 11 : i64} {
  func.func @_attention_kernel(%arg0: i32, %arg1: memref<1x1x32xf32, #tpu.memory_space<vmem>>, %arg2: memref<8x32xf32, #tpu.memory_space<vmem>>, %arg3: memref<32x32xf32, #tpu.memory_space<vmem>>, %arg4: memref<1x32xf32, #tpu.memory_space<vmem>>, %arg5: memref<1x32xf32, #tpu.memory_space<vmem>>, %arg6: memref<1x1x8xf32, #tpu.memory_space<vmem>>, %arg7: memref<8x32xf32, #tpu.memory_space<vmem>>) attributes {dimension_semantics = [#tpu.dimension_semantics<parallel>], iteration_bounds = array<i64: 2>, scalar_prefetch = 0 : i64, scratch_operands = 0 : i64, tpu.core_type = #tpu.core_type<tc>, window_params = [{transform_indices = @transform_0, window_bounds = array<i64: 1, 1, 32>}, {transform_indices = @transform_1, window_bounds = array<i64: 8, 32>}, {pipeline_mode = #tpu.pipeline_mode<synchronous>, transform_indices = @transform_2, window_bounds = array<i64: 32, 32>}, {pipeline_mode = #tpu.pipeline_mode<synchronous>, transform_indices = @transform_3, window_bounds = array<i64: 1, 32>}, {pipeline_mode = #tpu.pipeline_mode<synchronous>, transform_indices = @transform_4, window_bounds = array<i64: 1, 32>}, {transform_indices = @transform_5, window_bounds = array<i64: 1, 1, 8>}, {transform_indices = @transform_6, window_bounds = array<i64: 8, 32>}]} {
    %c0 = arith.constant 0 : index
    %c0_0 = arith.constant 0 : index
    %0 = vector.load %arg2[%c0, %c0_0] : memref<8x32xf32, #tpu.memory_space<vmem>>, vector<8x32xf32>
    %c0_1 = arith.constant 0 : index
    %c0_2 = arith.constant 0 : index
    %1 = vector.load %arg3[%c0_1, %c0_2] : memref<32x32xf32, #tpu.memory_space<vmem>>, vector<32x32xf32>
    %cst = arith.constant dense<0.000000e+00> : vector<8x32xf32>
    %2 = tpu.matmul %0, %1, %cst {dimension_numbers = #tpu.dot_dimension_numbers<[1], [0], [0], [1], [0, 0, 1, 1], [], []>} : vector<8x32xf32>, vector<32x32xf32>, vector<8x32xf32> -> vector<8x32xf32>
    %c0_3 = arith.constant 0 : index
    %c0_4 = arith.constant 0 : index
    %3 = vector.load %arg4[%c0_3, %c0_4] : memref<1x32xf32, #tpu.memory_space<vmem>>, vector<1x32xf32>
    %4 = vector.broadcast %3 : vector<1x32xf32> to vector<8x32xf32>
    %5 = arith.addf %2, %4 : vector<8x32xf32>
    %c0_5 = arith.constant 0 : index
    %c0_6 = arith.constant 0 : index
    %6 = vector.load %arg7[%c0_5, %c0_6] : memref<8x32xf32, #tpu.memory_space<vmem>>, vector<8x32xf32>
    tpu.vector_store %arg7[%c0_5, %c0_6], %5 {strides = array<i32>} : memref<8x32xf32, #tpu.memory_space<vmem>>, vector<8x32xf32>,
    %c0_7 = arith.constant 0 : index
    %c0_8 = arith.constant 0 : index
    %7 = vector.load %arg5[%c0_7, %c0_8] : memref<1x32xf32, #tpu.memory_space<vmem>>, vector<1x32xf32>
    %c0_9 = arith.constant 0 : index
    %c0_10 = arith.constant 0 : index
    %c0_11 = arith.constant 0 : index
    %8 = vector.load %arg1[%c0_9, %c0_10, %c0_11] : memref<1x1x32xf32, #tpu.memory_space<vmem>>, vector<1x1x32xf32>
    %9 = vector.shape_cast %8 : vector<1x1x32xf32> to vector<1x32xf32>
    %10 = vector.broadcast %9 : vector<1x32xf32> to vector<8x32xf32>
    %11 = arith.addf %2, %10 : vector<8x32xf32>
    %12 = math.tanh %11 : vector<8x32xf32>
    %cst_12 = arith.constant dense<0.000000e+00> : vector<1x8xf32>
    %13 = tpu.matmul %7, %12, %cst_12 {dimension_numbers = #tpu.dot_dimension_numbers<[1], [1], [0], [0], [0, 0, 1, 0], [], []>} : vector<1x32xf32>, vector<8x32xf32>, vector<1x8xf32> -> vector<1x8xf32>
    %c0_13 = arith.constant 0 : index
    %c0_14 = arith.constant 0 : index
    %c0_15 = arith.constant 0 : index
    %14 = vector.load %arg6[%c0_13, %c0_14, %c0_15] : memref<1x1x8xf32, #tpu.memory_space<vmem>>, vector<1x1x8xf32>
    %15 = vector.shape_cast %14 : vector<1x1x8xf32> to vector<1x8xf32>
    %16 = vector.shape_cast %13 : vector<1x8xf32> to vector<1x1x8xf32>
    tpu.vector_store %arg6[%c0_13, %c0_14, %c0_15], %16 {strides = array<i32>} : memref<1x1x8xf32, #tpu.memory_space<vmem>>, vector<1x1x8xf32>,
    return
  }
  func.func @transform_0(%arg0: i32) -> (i32, i32, i32) {
    %c0_i32 = arith.constant 0 : i32
    %c0_i32_0 = arith.constant 0 : i32
    %c0_i32_1 = arith.constant 0 : i32
    return %arg0, %c0_i32, %c0_i32_0 : i32, i32, i32
  }
  func.func @transform_1(%arg0: i32) -> (i32, i32) {
    %c0_i32 = arith.constant 0 : i32
    %c0_i32_0 = arith.constant 0 : i32
    return %arg0, %c0_i32 : i32, i32
  }
  func.func @transform_2(%arg0: i32) -> (i32, i32) {
    %c0_i32 = arith.constant 0 : i32
    %c0_i32_0 = arith.constant 0 : i32
    %c0_i32_1 = arith.constant 0 : i32
    return %c0_i32, %c0_i32_0 : i32, i32
  }
  func.func @transform_3(%arg0: i32) -> (i32, i32) {
    %c0_i32 = arith.constant 0 : i32
    %c0_i32_0 = arith.constant 0 : i32
    %c0_i32_1 = arith.constant 0 : i32
    return %c0_i32, %c0_i32_0 : i32, i32
  }
  func.func @transform_4(%arg0: i32) -> (i32, i32) {
    %c0_i32 = arith.constant 0 : i32
    %c0_i32_0 = arith.constant 0 : i32
    %c0_i32_1 = arith.constant 0 : i32
    return %c0_i32, %c0_i32_0 : i32, i32
  }
  func.func @transform_5(%arg0: i32) -> (i32, i32, i32) {
    %c0_i32 = arith.constant 0 : i32
    %c0_i32_0 = arith.constant 0 : i32
    %c0_i32_1 = arith.constant 0 : i32
    return %arg0, %c0_i32, %c0_i32_0 : i32, i32, i32
  }
  func.func @transform_6(%arg0: i32) -> (i32, i32) {
    %c0_i32 = arith.constant 0 : i32
    %c0_i32_0 = arith.constant 0 : i32
    return %arg0, %c0_i32 : i32, i32
  }
}

</mosaic_0001>

<llo_original>
// kernel: tpu_custom_call.1
$region0: #{tpu_custom_call.1}
  #allocation0 [shape = 'u32[]', space=smem, size = 0x4, offset = 0x4, fixed_abs, tag = 'smem constant byte address 0x4 - core index']
  #allocation1 [shape = 'u32[144,128]{1,0:T(1,128)}', space=vmem, size = 0x12000, scoped, tag = 'internal scratch']
  %s0 = inlined_call_operand.hbm [shape: f32[2,1,32], index: 0, kind: input, shape index: {}]
  %s1 = inlined_call_operand.hbm [shape: f32[16,32], index: 1, kind: input, shape index: {}]
  %s2 = inlined_call_operand.hbm [shape: f32[32,32], index: 2, kind: input, shape index: {}]
  %s3 = inlined_call_operand.vmem [shape: f32[1,32], index: 3, kind: input, shape index: {}]
  %s4 = inlined_call_operand.vmem [shape: f32[1,32], index: 4, kind: input, shape index: {}]
  %s5 = inlined_call_operand.hbm [shape: f32[2,1,8], index: 5, kind: output, shape index: {0}]
  %s6 = inlined_call_operand.hbm [shape: f32[16,32], index: 6, kind: output, shape index: {1}]
  %7 = xla_tuple %s5, %s6
  %s8 = sld [smem:[#allocation0]]
  $region73: #{tpu_custom_call.1} parent=0
    _
  %s10 = ssub.s32 1, %s8
  %s11 = scalar_select 0, %s10, %s8
  $region1: #{tpu_custom_call.1} parent=0
    #allocation2 [shape = 'u8[1024]{0}', space=vmem, size = 0x400, scoped, tag = 'input window, operand 0']
    #allocation3 [shape = 's32[2]{0}', space=sflag, size = 0x8, scoped, tag = 'scoped memory for tpu_custom_call.1']
    #allocation4 [shape = 's32[2]{0}', space=sflag, size = 0x8, scoped, tag = 'scoped memory for tpu_custom_call.1']
    #allocation5 [shape = 'u8[8192]{0}', space=vmem, size = 0x2000, scoped, tag = 'input window, operand 1']
    #allocation6 [shape = 's32[2]{0}', space=sflag, size = 0x8, scoped, tag = 'scoped memory for tpu_custom_call.1']
    #allocation7 [shape = 'u8[16384]{0}', space=vmem, size = 0x4000, scoped, tag = 'input window, operand 2, single buffered']
    #allocation8 [shape = 'u8[1024]{0}', space=vmem, size = 0x400, scoped, tag = 'output window, operand 0']
    #allocation9 [shape = 'u8[8192]{0}', space=vmem, size = 0x2000, scoped, tag = 'output window, operand 1']
    #allocation10 [shape = 's32[2]{0}', space=sflag, size = 0x8, scoped, tag = 'scoped memory for tpu_custom_call.1']
    %12 = vsyncpa [#allocation3], 0
    %s13 = scalar_lea.sflag [#allocation3], 1
    %14 = vsyncpa %s13, 0
    %15 = vsyncpa [#allocation6], 0
    %s16 = scalar_lea.sflag [#allocation6], 1
    %17 = vsyncpa %s16, 0
    %18 = vsyncpa [#allocation4], 0
    %s19 = scalar_lea.sflag [#allocation4], 1
    %20 = vsyncpa %s19, 0
    %21 = vsyncpa [#allocation10], 0
    %s22 = scalar_lea.sflag [#allocation10], 1
    %23 = vsyncpa %s22, 0
    loop: start=0, step=1, limit=4
    $region2: #{tpu_custom_call.1} parent=1 // loop_pre_header
      _
    $region3: #{tpu_custom_call.1} parent=1 // loop_header
      %s25 = sphi 0, %s29
      %p26 = scmp.ge.s32.totalorder %s25, 4
      %s35 = sphi 0, %s37
      %s38 = sphi 0, %s35
      %s39 = sphi 0, %s38
      %s55 = sphi 0, %s39
      %s61 = sphi 0, %s63
      %s64 = sphi 0, %s61
      %s65 = sphi 0, %s64
      %s81 = sphi 0, %s65
      %s85 = sphi 0, %s85
      %s87 = sphi 0, %s85
      %s88 = sphi 0, %s87
      %s102 = sphi 0, %s88
      %s106 = sphi 0, %s106
      %s108 = sphi 0, %s106
      %s109 = sphi 0, %s108
      %s123 = sphi 0, %s109
      %s127 = sphi 0, %s127
      %s129 = sphi 0, %s127
      %s130 = sphi 0, %s129
      %s144 = sphi 0, %s130
      %s150 = sphi 0, %s152
      %s153 = sphi 0, %s150
      %s154 = sphi 0, %s153
      %s170 = sphi 0, %s154
      %s176 = sphi 0, %s178
      %s179 = sphi 0, %s176
      %s180 = sphi 0, %s179
      %s196 = sphi 0, %s180
    $region4: #{tpu_custom_call.1} parent=1 // loop_header_branch
      %28 = sbr.rel (%p26) target = $region8
    $region5: #{tpu_custom_call.1} parent=1 // loop_body
      %s30 = ssub.s32 %s25, 1
      %s31 = ssub.s32 %s25, 2
      %s32 = sadd.s32 %s25, 1
      %s33 = ssub.s32 %s25, %s32
      %p34 = scmp.eq.s32.totalorder %s33, 0
      %s36 = sadd.s32 %s35, 1
      %s37 = scalar_select %p34, %s35, %s36
      %p40 = pneg %p34
      %p41 = scmp.eq.s32.totalorder %s25, 1
      %p42 = por %p40, %p41
      %p43 = scmp.ne.s32.totalorder %s35, %s38
      %p44 = scmp.eq.s32.totalorder %s25, 0
      %p45 = por %p43, %p44
      %p46 = scmp.ne.s32.totalorder %s35, %s38
      %p47 = scmp.eq.s32.totalorder %s30, 1
      %p48 = por %p46, %p47
      %p49 = scmp.ne.s32.totalorder %s38, %s39
      %p50 = scmp.eq.s32.totalorder %s30, 0
      %p51 = por %p49, %p50
      %p52 = scmp.ne.s32.totalorder %s38, %s39
      %p53 = scmp.eq.s32.totalorder %s31, 1
      %p54 = por %p52, %p53
      %p56 = scmp.ne.s32.totalorder %s39, %s55
      %p57 = scmp.eq.s32.totalorder %s31, 0
      %p58 = por %p56, %p57
      %s59 = ssub.s32 %s25, %s32
      %p60 = scmp.eq.s32.totalorder %s59, 0
      %s62 = sadd.s32 %s61, 1
      %s63 = scalar_select %p60, %s61, %s62
      %p66 = pneg %p60
      %p67 = scmp.eq.s32.totalorder %s25, 1
      %p68 = por %p66, %p67
      %p69 = scmp.ne.s32.totalorder %s61, %s64
      %p70 = scmp.eq.s32.totalorder %s25, 0
      %p71 = por %p69, %p70
      %p72 = scmp.ne.s32.totalorder %s61, %s64
      %p73 = scmp.eq.s32.totalorder %s30, 1
      %p74 = por %p72, %p73
      %p75 = scmp.ne.s32.totalorder %s64, %s65
      %p76 = scmp.eq.s32.totalorder %s30, 0
      %p77 = por %p75, %p76
      %p78 = scmp.ne.s32.totalorder %s64, %s65
      %p79 = scmp.eq.s32.totalorder %s31, 1
      %p80 = por %p78, %p79
      %p82 = scmp.ne.s32.totalorder %s65, %s81
      %p83 = scmp.eq.s32.totalorder %s31, 0
      %p84 = por %p82, %p83
      %s86 = sadd.s32 %s85, 1
      %p89 = scmp.eq.s32.totalorder %s25, 1
      %p90 = scmp.ne.s32.totalorder %s85, %s87
      %p91 = scmp.eq.s32.totalorder %s25, 0
      %p92 = por %p90, %p91
      %p93 = scmp.ne.s32.totalorder %s85, %s87
      %p94 = scmp.eq.s32.totalorder %s30, 1
      %p95 = por %p93, %p94
      %p96 = scmp.ne.s32.totalorder %s87, %s88
      %p97 = scmp.eq.s32.totalorder %s30, 0
      %p98 = por %p96, %p97
      %p99 = scmp.ne.s32.totalorder %s87, %s88
      %p100 = scmp.eq.s32.totalorder %s31, 1
      %p101 = por %p99, %p100
      %p103 = scmp.ne.s32.totalorder %s88, %s102
      %p104 = scmp.eq.s32.totalorder %s31, 0
      %p105 = por %p103, %p104
      %s107 = sadd.s32 %s106, 1
      %p110 = scmp.eq.s32.totalorder %s25, 1
      %p111 = scmp.ne.s32.totalorder %s106, %s108
      %p112 = scmp.eq.s32.totalorder %s25, 0
      %p113 = por %p111, %p112
      %p114 = scmp.ne.s32.totalorder %s106, %s108
      %p115 = scmp.eq.s32.totalorder %s30, 1
      %p116 = por %p114, %p115
      %p117 = scmp.ne.s32.totalorder %s108, %s109
      %p118 = scmp.eq.s32.totalorder %s30, 0
      %p119 = por %p117, %p118
      %p120 = scmp.ne.s32.totalorder %s108, %s109
      %p121 = scmp.eq.s32.totalorder %s31, 1
      %p122 = por %p120, %p121
      %p124 = scmp.ne.s32.totalorder %s109, %s123
      %p125 = scmp.eq.s32.totalorder %s31, 0
      %p126 = por %p124, %p125
      %s128 = sadd.s32 %s127, 1
      %p131 = scmp.eq.s32.totalorder %s25, 1
      %p132 = scmp.ne.s32.totalorder %s127, %s129
      %p133 = scmp.eq.s32.totalorder %s25, 0
      %p134 = por %p132, %p133
      %p135 = scmp.ne.s32.totalorder %s127, %s129
      %p136 = scmp.eq.s32.totalorder %s30, 1
      %p137 = por %p135, %p136
      %p138 = scmp.ne.s32.totalorder %s129, %s130
      %p139 = scmp.eq.s32.totalorder %s30, 0
      %p140 = por %p138, %p139
      %p141 = scmp.ne.s32.totalorder %s129, %s130
      %p142 = scmp.eq.s32.totalorder %s31, 1
      %p143 = por %p141, %p142
      %p145 = scmp.ne.s32.totalorder %s130, %s144
      %p146 = scmp.eq.s32.totalorder %s31, 0
      %p147 = por %p145, %p146
      %s148 = ssub.s32 %s25, %s32
      %p149 = scmp.eq.s32.totalorder %s148, 0
      %s151 = sadd.s32 %s150, 1
      %s152 = scalar_select %p149, %s150, %s151
      %p155 = pneg %p149
      %p156 = scmp.eq.s32.totalorder %s25, 1
      %p157 = por %p155, %p156
      %p158 = scmp.ne.s32.totalorder %s150, %s153
      %p159 = scmp.eq.s32.totalorder %s25, 0
      %p160 = por %p158, %p159
      %p161 = scmp.ne.s32.totalorder %s150, %s153
      %p162 = scmp.eq.s32.totalorder %s30, 1
      %p163 = por %p161, %p162
      %p164 = scmp.ne.s32.totalorder %s153, %s154
      %p165 = scmp.eq.s32.totalorder %s30, 0
      %p166 = por %p164, %p165
      %p167 = scmp.ne.s32.totalorder %s153, %s154
      %p168 = scmp.eq.s32.totalorder %s31, 1
      %p169 = por %p167, %p168
      %p171 = scmp.ne.s32.totalorder %s154, %s170
      %p172 = scmp.eq.s32.totalorder %s31, 0
      %p173 = por %p171, %p172
      %s174 = ssub.s32 %s25, %s32
      %p175 = scmp.eq.s32.totalorder %s174, 0
      %s177 = sadd.s32 %s176, 1
      %s178 = scalar_select %p175, %s176, %s177
      %p181 = pneg %p175
      %p182 = scmp.eq.s32.totalorder %s25, 1
      %p183 = por %p181, %p182
      %p184 = scmp.ne.s32.totalorder %s176, %s179
      %p185 = scmp.eq.s32.totalorder %s25, 0
      %p186 = por %p184, %p185
      %p187 = scmp.ne.s32.totalorder %s176, %s179
      %p188 = scmp.eq.s32.totalorder %s30, 1
      %p189 = por %p187, %p188
      %p190 = scmp.ne.s32.totalorder %s179, %s180
      %p191 = scmp.eq.s32.totalorder %s30, 0
      %p192 = por %p190, %p191
      %p193 = scmp.ne.s32.totalorder %s179, %s180
      %p194 = scmp.eq.s32.totalorder %s31, 1
      %p195 = por %p193, %p194
      %p197 = scmp.ne.s32.totalorder %s180, %s196
      %p198 = scmp.eq.s32.totalorder %s31, 0
      %p199 = por %p197, %p198
      %p200 = scmp.le.s32.totalorder 1, %s25
      %p201 = scmp.lt.s32.totalorder %s25, 3
      %p202 = pnand %p200, %p201
      %p203 = pneg %p202
      // Predicated region
      $region9: #{tpu_custom_call.1} parent=5 // pred_check
        _
      $region10: #{tpu_custom_call.1} parent=5 // pred_check_branch
        %205 = sbr.rel (%p202) target = $region12
      $region11: #{tpu_custom_call.1} parent=5 // pred_region
        %s206 = ssub.s32 %s25, 1
        // Predicated region
        $region13: #{tpu_custom_call.1} parent=11 // pred_check
          %p207 = pneg %p98
        $region14: #{tpu_custom_call.1} parent=11 // pred_check_branch
          %209 = sbr.rel (%p207) target = $region16
        $region15: #{tpu_custom_call.1} parent=11 // pred_region
          %s211 = ssub.s32 512, 512
          %212 = vsyncadd [#allocation6], %s211
          %s213 = sshll.u32 [#allocation7], 4
          %s214 = int_to_ptr.vmem [resolvable:$true] %s213
          %219 = dma.hbm_to_vmem [thread:$0]  %s2, 512, %s214, [#allocation6], 128, 128, 8
        $region16: #{tpu_custom_call.1} parent=11 // pred_fallthru
          _
        // Predicated region
        $region17: #{tpu_custom_call.1} parent=11 // pred_check
          %p220 = pneg %p119
        $region18: #{tpu_custom_call.1} parent=11 // pred_check_branch
          %222 = sbr.rel (%p220) target = $region20
        $region19: #{tpu_custom_call.1} parent=11 // pred_region
          _
        $region20: #{tpu_custom_call.1} parent=11 // pred_fallthru
          _
        // Predicated region
        $region21: #{tpu_custom_call.1} parent=11 // pred_check
          %p223 = pneg %p140
        $region22: #{tpu_custom_call.1} parent=11 // pred_check_branch
          %225 = sbr.rel (%p223) target = $region24
        $region23: #{tpu_custom_call.1} parent=11 // pred_region
          _
        $region24: #{tpu_custom_call.1} parent=11 // pred_fallthru
          _
      $region12: #{tpu_custom_call.1} parent=5 // pred_fallthru
        _
      %p226 = scmp.lt.s32.totalorder %s25, 2
      // Predicated region
      $region25: #{tpu_custom_call.1} parent=5 // pred_check
        %p227 = pneg %p226
      $region26: #{tpu_custom_call.1} parent=5 // pred_check_branch
        %229 = sbr.rel (%p227) target = $region28
      $region27: #{tpu_custom_call.1} parent=5 // pred_region
        // Predicated region
        $region29: #{tpu_custom_call.1} parent=27 // pred_check
          %p230 = pneg %p45
        $region30: #{tpu_custom_call.1} parent=27 // pred_check_branch
          %232 = sbr.rel (%p230) target = $region32
        $region31: #{tpu_custom_call.1} parent=27 // pred_region
          %s233 = sand.u32 %s35, 1
          %s234 = scalar_lea.sflag [#allocation3], %s233
          %s235 = sand.u32 %s35, 1
          %s236 = scalar_lea.vmem [#allocation2], %s235
          %s238 = ssub.s32 16, 16
          %239 = vsyncadd %s234, %s238
          %s240 = smul.addr %s25, 16
          %s241 = scalar_lea.hbm %s0, %s240
          %s243 = sshll.u32 %s236, 4
          %s244 = int_to_ptr.vmem [resolvable:$true] %s243
          %246 = dma.hbm_to_vmem [thread:$0]  %s241, 16, %s244, %s234
        $region32: #{tpu_custom_call.1} parent=27 // pred_fallthru
          _
        // Predicated region
        $region33: #{tpu_custom_call.1} parent=27 // pred_check
          %p247 = pneg %p71
        $region34: #{tpu_custom_call.1} parent=27 // pred_check_branch
          %249 = sbr.rel (%p247) target = $region36
        $region35: #{tpu_custom_call.1} parent=27 // pred_region
          %s250 = sand.u32 %s25, 1
          %s251 = scalar_lea.sflag [#allocation6], %s250
          %s252 = sand.u32 %s61, 1
          %s253 = smul.addr %s252, 8
          %s254 = scalar_lea.vmem [#allocation5], %s253
          %s256 = ssub.s32 128, 128
          %257 = vsyncadd %s251, %s256
          %s258 = smul.addr %s25, 128
          %s259 = scalar_lea.hbm %s1, %s258
          %s261 = sshll.u32 %s254, 4
          %s262 = int_to_ptr.vmem [resolvable:$true] %s261
          %264 = dma.hbm_to_vmem [thread:$0]  %s259, 128, %s262, %s251
        $region36: #{tpu_custom_call.1} parent=27 // pred_fallthru
          _
      $region28: #{tpu_custom_call.1} parent=5 // pred_fallthru
        _
      %p265 = scmp.le.s32.totalorder 1, %s25
      %p266 = scmp.lt.s32.totalorder %s25, 3
      %p267 = pnand %p265, %p266
      %p268 = pneg %p267
      // Predicated region
      $region37: #{tpu_custom_call.1} parent=5 // pred_check
        _
      $region38: #{tpu_custom_call.1} parent=5 // pred_check_branch
        %270 = sbr.rel (%p267) target = $region40
      $region39: #{tpu_custom_call.1} parent=5 // pred_region
        %s271 = ssub.s32 %s25, 1
        %s272 = sand.u32 %s38, 1
        %s273 = scalar_lea.sflag [#allocation3], %s272
        %s274 = sand.u32 %s38, 1
        %s275 = scalar_lea.vmem [#allocation2], %s274
        // Predicated region
        $region41: #{tpu_custom_call.1} parent=39 // pred_check
          %p276 = pneg %p51
        $region42: #{tpu_custom_call.1} parent=39 // pred_check_branch
          %278 = sbr.rel (%p276) target = $region44
        $region43: #{tpu_custom_call.1} parent=39 // pred_region
          %279 = dma.done %s273, 16
        $region44: #{tpu_custom_call.1} parent=39 // pred_fallthru
          _
        %s280 = sand.u32 %s30, 1
        %s281 = scalar_lea.sflag [#allocation6], %s280
        %s282 = sand.u32 %s64, 1
        %s283 = smul.addr %s282, 8
        %s284 = scalar_lea.vmem [#allocation5], %s283
        // Predicated region
        $region45: #{tpu_custom_call.1} parent=39 // pred_check
          %p285 = pneg %p77
        $region46: #{tpu_custom_call.1} parent=39 // pred_check_branch
          %287 = sbr.rel (%p285) target = $region48
        $region47: #{tpu_custom_call.1} parent=39 // pred_region
          %288 = dma.done %s281, 128
        $region48: #{tpu_custom_call.1} parent=39 // pred_fallthru
          _
        // Predicated region
        $region49: #{tpu_custom_call.1} parent=39 // pred_check
          %p289 = pneg %p98
        $region50: #{tpu_custom_call.1} parent=39 // pred_check_branch
          %291 = sbr.rel (%p289) target = $region52
        $region51: #{tpu_custom_call.1} parent=39 // pred_region
          %292 = dma.done [#allocation6], 512
        $region52: #{tpu_custom_call.1} parent=39 // pred_fallthru
          _
        %s293 = sand.u32 %s38, 1
        %s294 = scalar_lea.sflag [#allocation3], %s293
        %s295 = sand.u32 %s38, 1
        %s296 = scalar_lea.vmem [#allocation2], %s295
        %p297 = pneg %p51
        %p298 = pneg %p48
        %s299 = sand.u32 %s30, 1
        %s300 = scalar_lea.sflag [#allocation6], %s299
        %s301 = sand.u32 %s64, 1
        %s302 = smul.addr %s301, 8
        %s303 = scalar_lea.vmem [#allocation5], %s302
        %p304 = pneg %p77
        %p305 = pneg %p74
        %p306 = pneg %p98
        %p307 = pneg %p95
        %p308 = pneg %p119
        %p309 = pneg %p116
        %p310 = pneg %p140
        %p311 = pneg %p137
        %p312 = pneg %p166
        %p313 = pneg %p163
        %s314 = sand.u32 %s153, 1
        %s315 = scalar_lea.sflag [#allocation4], %s314
        %s316 = sand.u32 %s153, 1
        %s317 = scalar_lea.vmem [#allocation8], %s316
        %p318 = pneg %p192
        %p319 = pneg %p189
        %s320 = sand.u32 %s179, 1
        %s321 = scalar_lea.sflag [#allocation10], %s320
        %s322 = sand.u32 %s179, 1
        %s323 = smul.addr %s322, 8
        %s324 = scalar_lea.vmem [#allocation9], %s323
        %v325 = vld [vmem:[%s284] sm:$0xff]
        %v326 = vld [vmem:[#allocation7] sm:$0xff]
        %v327 = vld [vmem:[#allocation7 + $0x8] sm:$0xff]
        %v328 = vld [vmem:[#allocation7 + $0x10] sm:$0xff]
        %v329 = vld [vmem:[#allocation7 + $0x18] sm:$0xff]
        %vm330 = vcmask 261120
        %v332 = vsel %vm330, %v325, 0
        %334 = vmatprep.subr.mxu0 0.0
        %335 = vmatpush1.msra.mxu0 %v326
        %336 = vmatprep.subr.mxu0 0.0
        %337 = vmatpush1.msra.mxu0 %v327
        %338 = vmatprep.subr.mxu0 0.0
        %339 = vmatpush1.msra.mxu0 %v328
        %340 = vmatprep.subr.mxu0 0.0
        %341 = vmatpush1.msra.mxu0 %v329
        %342 = vmatprep.subr.mxu0 0.0
        %343 = vmatpush1.msra.mxu0 0.0
        %344 = vmatprep.subr.mxu0 0.0
        %345 = vmatpush1.msra.mxu0 0.0
        %346 = vmatprep.subr.mxu0 0.0
        %347 = vmatpush1.msra.mxu0 0.0
        %348 = vmatprep.subr.mxu0 0.0
        %349 = vmatpush1.msra.mxu0 0.0
        %350 = vmatprep.subr.mxu0 0.0
        %351 = vmatpush1.msra.mxu0 0.0
        %352 = vmatprep.subr.mxu0 0.0
        %353 = vmatpush1.msra.mxu0 0.0
        %354 = vmatprep.subr.mxu0 0.0
        %355 = vmatpush1.msra.mxu0 0.0
        %356 = vmatprep.subr.mxu0 0.0
        %357 = vmatpush1.msra.mxu0 0.0
        %358 = vmatprep.subr.mxu0 0.0
        %359 = vmatpush1.msra.mxu0 0.0
        %360 = vmatprep.subr.mxu0 0.0
        %361 = vmatpush1.msra.mxu0 0.0
        %362 = vmatprep.subr.mxu0 0.0
        %363 = vmatpush1.msra.mxu0 0.0
        %364 = vmatprep.subr.mxu0 0.0
        %365 = vmatpush1.msra.mxu0 0.0
        %366 = vmatprep.subr.mxu0 0.0
        %367 = vmatpush1.msra.mxu0 0.0
        %368 = vmatprep.subr.mxu0 0.0
        %369 = vmatpush1.msra.mxu0 0.0
        %370 = vmatprep.subr.mxu0 0.0
        %371 = vmatpush1.msra.mxu0 0.0
        %372 = vmatprep.subr.mxu0 0.0
        %373 = vmatpush1.msra.mxu0 0.0
        %374 = vmatprep.subr.mxu0 0.0
        %375 = vmatpush1.msra.mxu0 0.0
        %376 = vmatprep.subr.mxu0 0.0
        %377 = vmatpush1.msra.mxu0 0.0
        %378 = vmatprep.subr.mxu0 0.0
        %379 = vmatpush1.msra.mxu0 0.0
        %380 = vmatprep.subr.mxu0 0.0
        %381 = vmatpush1.msra.mxu0 0.0
        %382 = vmatprep.subr.mxu0 0.0
        %383 = vmatpush1.msra.mxu0 0.0
        %384 = vmatprep.subr.mxu0 0.0
        %385 = vmatpush1.msra.mxu0 0.0
        %386 = vmatprep.subr.mxu0 0.0
        %387 = vmatpush1.msra.mxu0 0.0
        %388 = vmatprep.subr.mxu0 0.0
        %389 = vmatpush1.msra.mxu0 0.0
        %390 = vmatprep.subr.mxu0 0.0
        %391 = vmatpush1.msra.mxu0 0.0
        %392 = vmatprep.subr.mxu0 0.0
        %393 = vmatpush1.msra.mxu0 0.0
        %394 = vmatprep.subr.mxu0 0.0
        %395 = vmatpush1.msra.mxu0 0.0
        %396 = vmatprep.subr.mxu0 0.0
        %397 = vmatpush1.msra.mxu0 0.0
        %398 = vmatprep.mubr.f32.mxu0 0.0
        %399 = vmatmul.mubr.f32.gmra.mrb[0].mxu0 %v332
        %v400 = vpop.f32.mrb[0].mxu0
        %v401 = vadd.f32 0.0, %v400
        %v402 = vpop.f32.mrb[0].mxu0
        %403 = vdwg.mxu0
        %v404 = vld [vmem:[%s3] sm:$0x1]
        %v406 = vlaneseq
        %v407 = vshrl.u32 %v406, 7
        %v408 = vsub.s32 0, %v407
        %v409 = vrot.slane %v404, %v408
        %v411 = vadd.f32 %v401, %v409
        %412 = vst.msk [vmem:[%s324] sm:$0xff] %vm330, %v411
        %v413 = vld [vmem:[%s4] sm:$0x1]
        %v414 = vld [vmem:[%s275] sm:$0x1]
        %v416 = vlaneseq
        %v417 = vshrl.u32 %v416, 7
        %v418 = vsub.s32 0, %v417
        %v419 = vrot.slane %v414, %v418
        %v421 = vadd.f32 %v401, %v419
        %v422 = vtanh.pop %v421
        %v424 = vsel %vm330, %v413, 0
        %v427 = vsel %vm330, %v422, 0
        %429 = vmatprep.subr.mxu0 0.0
        %430 = vmatpush1.xpose.msra.mxu0 %v427
        %431 = vmatprep.subr.mxu0 0.0
        %432 = vmatpush1.xpose.msra.mxu0 0.0
        %433 = vmatprep.subr.mxu0 0.0
        %434 = vmatpush1.xpose.msra.mxu0 0.0
        %435 = vmatprep.subr.mxu0 0.0
        %436 = vmatpush1.xpose.msra.mxu0 0.0
        %437 = vmatprep.subr.mxu0 0.0
        %438 = vmatpush1.xpose.msra.mxu0 0.0
        %439 = vmatprep.subr.mxu0 0.0
        %440 = vmatpush1.xpose.msra.mxu0 0.0
        %441 = vmatprep.subr.mxu0 0.0
        %442 = vmatpush1.xpose.msra.mxu0 0.0
        %443 = vmatprep.subr.mxu0 0.0
        %444 = vmatpush1.xpose.msra.mxu0 0.0
        %445 = vmatprep.subr.mxu0 0.0
        %446 = vmatpush1.xpose.msra.mxu0 0.0
        %447 = vmatprep.subr.mxu0 0.0
        %448 = vmatpush1.xpose.msra.mxu0 0.0
        %449 = vmatprep.subr.mxu0 0.0
        %450 = vmatpush1.xpose.msra.mxu0 0.0
        %451 = vmatprep.subr.mxu0 0.0
        %452 = vmatpush1.xpose.msra.mxu0 0.0
        %453 = vmatprep.subr.mxu0 0.0
        %454 = vmatpush1.xpose.msra.mxu0 0.0
        %455 = vmatprep.subr.mxu0 0.0
        %456 = vmatpush1.xpose.msra.mxu0 0.0
        %457 = vmatprep.subr.mxu0 0.0
        %458 = vmatpush1.xpose.msra.mxu0 0.0
        %459 = vmatprep.subr.mxu0 0.0
        %460 = vmatpush1.xpose.msra.mxu0 0.0
        %461 = vmatprep.subr.mxu0 0.0
        %462 = vmatpush1.xpose.msra.mxu0 0.0
        %463 = vmatprep.subr.mxu0 0.0
        %464 = vmatpush1.xpose.msra.mxu0 0.0
        %465 = vmatprep.subr.mxu0 0.0
        %466 = vmatpush1.xpose.msra.mxu0 0.0
        %467 = vmatprep.subr.mxu0 0.0
        %468 = vmatpush1.xpose.msra.mxu0 0.0
        %469 = vmatprep.subr.mxu0 0.0
        %470 = vmatpush1.xpose.msra.mxu0 0.0
        %471 = vmatprep.subr.mxu0 0.0
        %472 = vmatpush1.xpose.msra.mxu0 0.0
        %473 = vmatprep.subr.mxu0 0.0
        %474 = vmatpush1.xpose.msra.mxu0 0.0
        %475 = vmatprep.subr.mxu0 0.0
        %476 = vmatpush1.xpose.msra.mxu0 0.0
        %477 = vmatprep.subr.mxu0 0.0
        %478 = vmatpush1.xpose.msra.mxu0 0.0
        %479 = vmatprep.subr.mxu0 0.0
        %480 = vmatpush1.xpose.msra.mxu0 0.0
        %481 = vmatprep.subr.mxu0 0.0
        %482 = vmatpush1.xpose.msra.mxu0 0.0
        %483 = vmatprep.subr.mxu0 0.0
        %484 = vmatpush1.xpose.msra.mxu0 0.0
        %485 = vmatprep.subr.mxu0 0.0
        %486 = vmatpush1.xpose.msra.mxu0 0.0
        %487 = vmatprep.subr.mxu0 0.0
        %488 = vmatpush1.xpose.msra.mxu0 0.0
        %489 = vmatprep.subr.mxu0 0.0
        %490 = vmatpush1.xpose.msra.mxu0 0.0
        %491 = vmatprep.subr.mxu0 0.0
        %492 = vmatpush1.xpose.msra.mxu0 0.0
        %493 = vmatprep.mubr.f32.mxu0 0.0
        %494 = vmatmul.mubr.f32.gmra.mrb[0].mxu0 %v424
        %v495 = vpop.f32.mrb[0].mxu0
        %v496 = vadd.f32 0.0, %v495
        %v497 = vpop.f32.mrb[0].mxu0
        %498 = vdwg.mxu0
        %vm499 = vcmask 57344
        %500 = vst.msk [vmem:[%s317] sm:$0x1] %vm499, %v496
        %s501 = sand.u32 %s153, 1
        %s502 = scalar_lea.sflag [#allocation4], %s501
        %s503 = sand.u32 %s153, 1
        %s504 = scalar_lea.vmem [#allocation8], %s503
        %s505 = sand.u32 %s179, 1
        %s506 = scalar_lea.sflag [#allocation10], %s505
        %s507 = sand.u32 %s179, 1
        %s508 = smul.addr %s507, 8
        %s509 = scalar_lea.vmem [#allocation9], %s508
        // Predicated region
        $region53: #{tpu_custom_call.1} parent=39 // pred_check
          %p510 = pneg %p163
        $region54: #{tpu_custom_call.1} parent=39 // pred_check_branch
          %512 = sbr.rel (%p510) target = $region56
        $region55: #{tpu_custom_call.1} parent=39 // pred_region
          %s514 = ssub.s32 16, 16
          %515 = vsyncadd %s502, %s514
          %s516 = smul.addr %s30, 16
          %s517 = scalar_lea.hbm %s5, %s516
          %s519 = sshll.u32 %s504, 4
          %s520 = int_to_ptr.vmem [resolvable:$true] %s519
          %522 = dma.vmem_to_hbm [thread:$0]  %s520, 16, %s517, %s502
        $region56: #{tpu_custom_call.1} parent=39 // pred_fallthru
          _
        // Predicated region
        $region57: #{tpu_custom_call.1} parent=39 // pred_check
          %p523 = pneg %p189
        $region58: #{tpu_custom_call.1} parent=39 // pred_check_branch
          %525 = sbr.rel (%p523) target = $region60
        $region59: #{tpu_custom_call.1} parent=39 // pred_region
          %s527 = ssub.s32 128, 128
          %528 = vsyncadd %s506, %s527
          %s529 = smul.addr %s30, 128
          %s530 = scalar_lea.hbm %s6, %s529
          %s532 = sshll.u32 %s509, 4
          %s533 = int_to_ptr.vmem [resolvable:$true] %s532
          %535 = dma.vmem_to_hbm [thread:$0]  %s533, 128, %s530, %s506
        $region60: #{tpu_custom_call.1} parent=39 // pred_fallthru
          _
      $region40: #{tpu_custom_call.1} parent=5 // pred_fallthru
        _
      %p536 = scmp.le.s32.totalorder 2, %s25
      // Predicated region
      $region61: #{tpu_custom_call.1} parent=5 // pred_check
        %p537 = pneg %p536
      $region62: #{tpu_custom_call.1} parent=5 // pred_check_branch
        %539 = sbr.rel (%p537) target = $region64
      $region63: #{tpu_custom_call.1} parent=5 // pred_region
        %s540 = ssub.s32 %s25, 2
        // Predicated region
        $region65: #{tpu_custom_call.1} parent=63 // pred_check
          %p541 = pneg %p169
        $region66: #{tpu_custom_call.1} parent=63 // pred_check_branch
          %543 = sbr.rel (%p541) target = $region68
        $region67: #{tpu_custom_call.1} parent=63 // pred_region
          %s544 = sand.u32 %s154, 1
          %s545 = scalar_lea.sflag [#allocation4], %s544
          %s546 = sand.u32 %s154, 1
          %s547 = scalar_lea.vmem [#allocation8], %s546
          %548 = dma.done %s545, 16
        $region68: #{tpu_custom_call.1} parent=63 // pred_fallthru
          _
        // Predicated region
        $region69: #{tpu_custom_call.1} parent=63 // pred_check
          %p549 = pneg %p195
        $region70: #{tpu_custom_call.1} parent=63 // pred_check_branch
          %551 = sbr.rel (%p549) target = $region72
        $region71: #{tpu_custom_call.1} parent=63 // pred_region
          %s552 = sand.u32 %s180, 1
          %s553 = scalar_lea.sflag [#allocation10], %s552
          %s554 = sand.u32 %s180, 1
          %s555 = smul.addr %s554, 8
          %s556 = scalar_lea.vmem [#allocation9], %s555
          %557 = dma.done %s553, 128
        $region72: #{tpu_custom_call.1} parent=63 // pred_fallthru
          _
      $region64: #{tpu_custom_call.1} parent=5 // pred_fallthru
        _
    $region6: #{tpu_custom_call.1} parent=1 // loop_footer
      %s29 = sadd.s32 1, %s25
    $region7: #{tpu_custom_call.1} parent=1 // loop_footer_branch
      %24 = sbr.rel target = $region3
    $region8: #{tpu_custom_call.1} parent=1 // loop_exit
      _
    %558 = vsyncpa [#allocation3], 1
    %s559 = scalar_lea.sflag [#allocation3], 1
    %560 = vsyncpa %s559, 1
    %561 = vsyncpa [#allocation6], 1
    %s562 = scalar_lea.sflag [#allocation6], 1
    %563 = vsyncpa %s562, 1
    %564 = vsyncpa [#allocation4], 1
    %s565 = scalar_lea.sflag [#allocation4], 1
    %566 = vsyncpa %s565, 1
    %567 = vsyncpa [#allocation10], 1
    %s568 = scalar_lea.sflag [#allocation10], 1
    %569 = vsyncpa %s568, 1

</llo_original>
